<compile_context>
chip_gen: v7x
topology: tpu7x:2x2x1
jax: 0.10.0
libtpu: 0.0.40
codegen_flags: <defaults>
</compile_context>

<pallas_src>
import jax
import jax.numpy as jnp
from jax.experimental import pallas as pl
from jax.experimental.pallas import tpu as pltpu

LEAKY_SLOPE = 0.01  # F.leaky_relu default negative_slope


# ----------------------------------------------------------------------------
# Fused kernel: partial GAP accumulation; on last HW step: conv1(+BN) -> lrelu -> conv2
# ----------------------------------------------------------------------------
def _aig_gate_kernel(x_ref, w1_ref, b1_ref, w2_ref, b2_ref, o_ref, acc_ref):
    # x_ref:  (n_tile, C, hw_tile) -- H*W lane-dense, C on sublanes.
    # acc_ref: (n_tile, C) f32 GAP accumulator, persists across HW grid steps.
    hw_step = pl.program_id(1)

    @pl.when(hw_step == 0)
    def _init():
        acc_ref[...] = jnp.zeros_like(acc_ref)

    # Partial global-average-pool: cross-lane sum (XLU); f32 accumulation even
    # when x is bf16.
    acc_ref[...] += jnp.sum(x_ref[...].astype(jnp.float32), axis=-1)

    @pl.when(hw_step == pl.num_programs(1) - 1)
    def _finalize():
        pooled = acc_ref[...]                                  # 1/(H*W) folded into w1
        h = jnp.dot(pooled, w1_ref[...],
                    preferred_element_type=jnp.float32) + b1_ref[...]  # conv1 + folded BN
        h = jnp.maximum(h, LEAKY_SLOPE * h)                    # F.leaky_relu
        o_ref[...] = jnp.dot(h, w2_ref[...],
                             preferred_element_type=jnp.float32) + b2_ref[...]  # conv2


def _pick_hw_tile(hw, c, n_tile, itemsize, budget_bytes=4 << 20, max_tile=2048):
    """Largest multiple of 128 dividing hw, within the per-buffer VMEM budget."""
    if hw % 128 != 0:
        return hw                      # full-extent block on the lane axis (e.g. 7*7)
    per_lane = n_tile * c * itemsize
    max_lanes = max(128, (budget_bytes // per_lane) // 128 * 128)
    t = min(hw, max_lanes, max_tile)
    while t >= 128:
        if hw % t == 0:
            return t
        t -= 128
    return hw


@jax.jit
def _forward(x, w1, b1, w2, b2):
    N, C, H, W = x.shape
    hw = H * W
    c4 = w1.shape[1]

    xr = x.reshape(N, C, hw)           # free reshape: NCHW is already (N, C, H*W)-contiguous
    w1_eff = w1 * (1.0 / hw)           # fold GAP mean's 1/(H*W) into conv1 weights

    n_tile = 8 if N % 8 == 0 else N    # keep batch tile 8-aligned or full
    hw_tile = _pick_hw_tile(hw, C, n_tile, x.dtype.itemsize)
    grid = (N // n_tile, hw // hw_tile)

    resident = lambda n, k: (0, 0)     # weights/biases: same block at every grid step
    cost = pl.CostEstimate(
        flops=int(N * C * hw + 2 * N * C * c4 + 2 * N * c4 * 2),
        transcendentals=0,
        bytes_accessed=int(xr.size * xr.dtype.itemsize
                           + (w1.size + b1.size + w2.size + b2.size) * 4
                           + N * 2 * 4),
    )

    out = pl.pallas_call(
        _aig_gate_kernel,
        out_shape=jax.ShapeDtypeStruct((N, 2), jnp.float32),
        grid=grid,
        in_specs=[
            pl.BlockSpec((n_tile, C, hw_tile), lambda n, k: (n, 0, k)),
            pl.BlockSpec(w1.shape, resident),
            pl.BlockSpec(b1.shape, resident),
            pl.BlockSpec(w2.shape, resident),
            pl.BlockSpec(b2.shape, resident),
        ],
        out_specs=pl.BlockSpec((n_tile, 2), lambda n, k: (n, 0)),
        scratch_shapes=[pltpu.VMEM((n_tile, C), jnp.float32)],
        compiler_params=pltpu.CompilerParams(
            dimension_semantics=("parallel", "arbitrary")),
        cost_estimate=cost,
    )(xr, w1_eff, b1, w2, b2)
    return out.reshape(N, 2, 1, 1)     # match PyTorch output shape (N, 2, 1, 1)


# ----------------------------------------------------------------------------
# Module wrapper with deterministic params (BN folded into conv1, eval mode)
# ----------------------------------------------------------------------------
class AIGGatePallas:
    def __init__(self, in_channel, key):
        assert in_channel % 4 == 0
        c4 = in_channel // 4
        k1, k2, k3, k4 = jax.random.split(key, 4)
        # 1x1 convs stored as (Cin, Cout) matmul weights.
        w1 = jax.random.normal(k1, (in_channel, c4), jnp.float32) * (2.0 / in_channel) ** 0.5
        b1 = jax.random.normal(k2, (c4,), jnp.float32) * 0.01
        w2 = jax.random.normal(k3, (c4, 2), jnp.float32) * (2.0 / c4) ** 0.5
        b2 = jax.random.normal(k4, (2,), jnp.float32) * 0.01
        # BatchNorm2d(c4) eval-mode params (PyTorch defaults).
        gamma = jnp.ones((c4,), jnp.float32)
        beta = jnp.zeros((c4,), jnp.float32)
        running_mean = jnp.zeros((c4,), jnp.float32)
        running_var = jnp.ones((c4,), jnp.float32)
        eps = 1e-5
        scale = gamma * jax.lax.rsqrt(running_var + eps)
        # Fold BN into conv1:  bn(conv1(x)) = x @ (w1*scale) + ((b1-mean)*scale + beta)
        self.w1 = w1 * scale[None, :]
        self.b1 = ((b1 - running_mean) * scale + beta).reshape(1, c4)
        self.w2 = w2
        self.b2 = b2.reshape(1, 2)

    def __call__(self, x):
        return _forward(x, self.w1, self.b1, self.w2, self.b2)


def _reference(x, w1, b1, w2, b2):
    """Pure-JAX reference for correctness checking."""
    N = x.shape[0]
    pooled = jnp.mean(x.astype(jnp.float32), axis=(2, 3))   # F.avg_pool2d over full H,W
    h = pooled @ w1 + b1[0]
    h = jnp.where(h >= 0.0, h, LEAKY_SLOPE * h)
    out = h @ w2 + b2[0]
    return out.reshape(N, 2, 1, 1)


if __name__ == "__main__":
    key = jax.random.PRNGKey(0)
    in_channel = 32
    model = AIGGatePallas(in_channel, key)

    # Small shape (single HW step) and larger shape (multi-step accumulation path).
    for spatial in (16, 64):
        x = jax.random.normal(jax.random.fold_in(key, spatial),
                              (2, in_channel, spatial, spatial), jnp.float32)  # NCHW
        out = jax.block_until_ready(model(x))
        assert out.shape == (2, 2, 1, 1)
        assert bool(jnp.all(jnp.isfinite(out)))
        ref = _reference(x, model.w1, model.b1, model.w2, model.b2)
        assert jnp.allclose(out, ref, atol=1e-4, rtol=1e-4), (spatial, out, ref)

    # bf16-input path (f32 accumulation inside the kernel).
    x = jax.random.normal(jax.random.fold_in(key, 99),
                          (2, in_channel, 32, 32), jnp.float32)
    out_bf = jax.block_until_ready(model(x.astype(jnp.bfloat16)))
    ref = _reference(x, model.w1, model.b1, model.w2, model.b2)
    assert jnp.allclose(out_bf, ref, atol=5e-2, rtol=5e-2), (out_bf, ref)

    print("KERNEL_OK")
</pallas_src>

<mosaic_0001>
module attributes {stable_mosaic.version = 11 : i64} {
  func.func @_aig_gate_kernel(%arg0: i32, %arg1: i32, %arg2: memref<2x32x256xf32, #tpu.memory_space<vmem>>, %arg3: memref<32x8xf32, #tpu.memory_space<vmem>>, %arg4: memref<1x8xf32, #tpu.memory_space<vmem>>, %arg5: memref<8x2xf32, #tpu.memory_space<vmem>>, %arg6: memref<1x2xf32, #tpu.memory_space<vmem>>, %arg7: memref<2x2xf32, #tpu.memory_space<vmem>>, %arg8: memref<2x32xf32, #tpu.memory_space<vmem>>) attributes {dimension_semantics = [#tpu.dimension_semantics<parallel>, #tpu.dimension_semantics<arbitrary>], iteration_bounds = array<i64: 1, 1>, scalar_prefetch = 0 : i64, scratch_operands = 1 : i64, tpu.core_type = #tpu.core_type<tc>, window_params = [{transform_indices = @transform_0, window_bounds = array<i64: 2, 32, 256>}, {pipeline_mode = #tpu.pipeline_mode<synchronous>, transform_indices = @transform_1, window_bounds = array<i64: 32, 8>}, {pipeline_mode = #tpu.pipeline_mode<synchronous>, transform_indices = @transform_2, window_bounds = array<i64: 1, 8>}, {pipeline_mode = #tpu.pipeline_mode<synchronous>, transform_indices = @transform_3, window_bounds = array<i64: 8, 2>}, {pipeline_mode = #tpu.pipeline_mode<synchronous>, transform_indices = @transform_4, window_bounds = array<i64: 1, 2>}, {transform_indices = @transform_5, window_bounds = array<i64: 2, 2>}]} {
    %c0_i32 = arith.constant 0 : i32
    %0 = arith.cmpi eq, %arg1, %c0_i32 : i32
    %1 = arith.extui %0 : i1 to i32
    %c0_i32_0 = arith.constant 0 : i32
    %2 = arith.cmpi ne, %1, %c0_i32_0 : i32
    scf.if %2 {
      %cst_9 = arith.constant 0.000000e+00 : f32
      %11 = vector.broadcast %cst_9 : f32 to vector<2x32xf32>
      %c0_10 = arith.constant 0 : index
      %c0_11 = arith.constant 0 : index
      %12 = vector.load %arg8[%c0_10, %c0_11] : memref<2x32xf32, #tpu.memory_space<vmem>>, vector<2x32xf32>
      tpu.vector_store %arg8[%c0_10, %c0_11], %11 {strides = array<i32>} : memref<2x32xf32, #tpu.memory_space<vmem>>, vector<2x32xf32>,
    } else {
    }
    %c0 = arith.constant 0 : index
    %c0_1 = arith.constant 0 : index
    %3 = vector.load %arg8[%c0, %c0_1] : memref<2x32xf32, #tpu.memory_space<vmem>>, vector<2x32xf32>
    %c0_2 = arith.constant 0 : index
    %c0_3 = arith.constant 0 : index
    %c0_4 = arith.constant 0 : index
    %4 = vector.load %arg2[%c0_2, %c0_3, %c0_4] : memref<2x32x256xf32, #tpu.memory_space<vmem>>, vector<2x32x256xf32>
    %cst = arith.constant dense<0.000000e+00> : vector<2x32xf32>
    %5 = vector.multi_reduction <add>, %4, %cst [2] : vector<2x32x256xf32> to vector<2x32xf32>
    %6 = arith.addf %3, %5 : vector<2x32xf32>
    %c0_5 = arith.constant 0 : index
    %c0_6 = arith.constant 0 : index
    %7 = vector.load %arg8[%c0_5, %c0_6] : memref<2x32xf32, #tpu.memory_space<vmem>>, vector<2x32xf32>
    tpu.vector_store %arg8[%c0_5, %c0_6], %6 {strides = array<i32>} : memref<2x32xf32, #tpu.memory_space<vmem>>, vector<2x32xf32>,
    %c0_i32_7 = arith.constant 0 : i32
    %8 = arith.cmpi eq, %arg1, %c0_i32_7 : i32
    %9 = arith.extui %8 : i1 to i32
    %c0_i32_8 = arith.constant 0 : i32
    %10 = arith.cmpi ne, %9, %c0_i32_8 : i32
    scf.if %10 {
      %c0_9 = arith.constant 0 : index
      %c0_10 = arith.constant 0 : index
      %11 = vector.load %arg8[%c0_9, %c0_10] : memref<2x32xf32, #tpu.memory_space<vmem>>, vector<2x32xf32>
      %c0_11 = arith.constant 0 : index
      %c0_12 = arith.constant 0 : index
      %12 = vector.load %arg3[%c0_11, %c0_12] : memref<32x8xf32, #tpu.memory_space<vmem>>, vector<32x8xf32>
      %cst_13 = arith.constant dense<0.000000e+00> : vector<2x8xf32>
      %13 = tpu.matmul %11, %12, %cst_13 {dimension_numbers = #tpu.dot_dimension_numbers<[1], [0], [0], [1], [0, 0, 1, 1], [], []>} : vector<2x32xf32>, vector<32x8xf32>, vector<2x8xf32> -> vector<2x8xf32>
      %c0_14 = arith.constant 0 : index
      %c0_15 = arith.constant 0 : index
      %14 = vector.load %arg4[%c0_14, %c0_15] : memref<1x8xf32, #tpu.memory_space<vmem>>, vector<1x8xf32>
      %15 = vector.broadcast %14 : vector<1x8xf32> to vector<2x8xf32>
      %16 = arith.addf %13, %15 : vector<2x8xf32>
      %cst_16 = arith.constant 0.00999999977 : f32
      %17 = vector.broadcast %cst_16 : f32 to vector<2x8xf32>
      %18 = arith.mulf %17, %16 : vector<2x8xf32>
      %19 = arith.maximumf %16, %18 : vector<2x8xf32>
      %c0_17 = arith.constant 0 : index
      %c0_18 = arith.constant 0 : index
      %20 = vector.load %arg5[%c0_17, %c0_18] : memref<8x2xf32, #tpu.memory_space<vmem>>, vector<8x2xf32>
      %cst_19 = arith.constant dense<0.000000e+00> : vector<2x2xf32>
      %21 = tpu.matmul %19, %20, %cst_19 {dimension_numbers = #tpu.dot_dimension_numbers<[1], [0], [0], [1], [0, 0, 1, 1], [], []>} : vector<2x8xf32>, vector<8x2xf32>, vector<2x2xf32> -> vector<2x2xf32>
      %c0_20 = arith.constant 0 : index
      %c0_21 = arith.constant 0 : index
      %22 = vector.load %arg6[%c0_20, %c0_21] : memref<1x2xf32, #tpu.memory_space<vmem>>, vector<1x2xf32>
      %23 = vector.broadcast %22 : vector<1x2xf32> to vector<2x2xf32>
      %24 = arith.addf %21, %23 : vector<2x2xf32>
      %c0_22 = arith.constant 0 : index
      %c0_23 = arith.constant 0 : index
      %25 = vector.load %arg7[%c0_22, %c0_23] : memref<2x2xf32, #tpu.memory_space<vmem>>, vector<2x2xf32>
      tpu.vector_store %arg7[%c0_22, %c0_23], %24 {strides = array<i32>} : memref<2x2xf32, #tpu.memory_space<vmem>>, vector<2x2xf32>,
    } else {
    }
    return
  }
  func.func @transform_0(%arg0: i32, %arg1: i32) -> (i32, i32, i32) {
    %c0_i32 = arith.constant 0 : i32
    %c0_i32_0 = arith.constant 0 : i32
    return %arg0, %c0_i32, %arg1 : i32, i32, i32
  }
  func.func @transform_1(%arg0: i32, %arg1: i32) -> (i32, i32) {
    %c0_i32 = arith.constant 0 : i32
    %c0_i32_0 = arith.constant 0 : i32
    %c0_i32_1 = arith.constant 0 : i32
    return %c0_i32, %c0_i32_0 : i32, i32
  }
  func.func @transform_2(%arg0: i32, %arg1: i32) -> (i32, i32) {
    %c0_i32 = arith.constant 0 : i32
    %c0_i32_0 = arith.constant 0 : i32
    %c0_i32_1 = arith.constant 0 : i32
    return %c0_i32, %c0_i32_0 : i32, i32
  }
  func.func @transform_3(%arg0: i32, %arg1: i32) -> (i32, i32) {
    %c0_i32 = arith.constant 0 : i32
    %c0_i32_0 = arith.constant 0 : i32
    %c0_i32_1 = arith.constant 0 : i32
    return %c0_i32, %c0_i32_0 : i32, i32
  }
  func.func @transform_4(%arg0: i32, %arg1: i32) -> (i32, i32) {
    %c0_i32 = arith.constant 0 : i32
    %c0_i32_0 = arith.constant 0 : i32
    %c0_i32_1 = arith.constant 0 : i32
    return %c0_i32, %c0_i32_0 : i32, i32
  }
  func.func @transform_5(%arg0: i32, %arg1: i32) -> (i32, i32) {
    %c0_i32 = arith.constant 0 : i32
    %c0_i32_0 = arith.constant 0 : i32
    return %arg0, %c0_i32 : i32, i32
  }
}

</mosaic_0001>

<llo_original>
// kernel: _forward.1
$region0: #{_forward.1}
  #allocation0 [shape = 'u32[]', space=smem, size = 0x4, offset = 0x4, fixed_abs, tag = 'smem constant byte address 0x4 - core index']
  #allocation1 [shape = 'u32[144,128]{1,0:T(1,128)}', space=vmem, size = 0x12000, scoped, tag = 'internal scratch']
  #allocation2 [shape = 'f32[2,32]{1,0:T(2,128)}', space=vmem, size = 0x400, scoped, tag = 'scratch operand']
  %s0 = inlined_call_operand.vmem [shape: f32[2,32,256], index: 0, kind: input, shape index: {}]
  %s1 = inlined_call_operand.vmem [shape: f32[32,8], index: 1, kind: input, shape index: {}]
  %s2 = inlined_call_operand.vmem [shape: f32[1,8], index: 2, kind: input, shape index: {}]
  %s3 = inlined_call_operand.vmem [shape: f32[8,2], index: 3, kind: input, shape index: {}]
  %s4 = inlined_call_operand.vmem [shape: f32[1,2], index: 4, kind: input, shape index: {}]
  %s5 = inlined_call_operand.hbm [shape: f32[2,2], index: 5, kind: output, shape index: {}]
  %s6 = sld [smem:[#allocation0]]
  $region38: #{_forward.1} parent=0
    _
  %s8 = ssub.s32 1, %s6
  %s9 = scalar_select 0, %s8, %s6
  $region1: #{_forward.1} parent=0
    #allocation3 [shape = 'u8[1024]{0}', space=vmem, size = 0x400, scoped, tag = 'output window, operand 0, single buffered']
    #allocation4 [shape = 's32[1]{0}', space=sflag, size = 0x4, scoped, tag = 'scoped memory for _forward.1']
    %10 = vsyncpa [#allocation4], 0
    // Predicated region
    $region2: #{_forward.1} parent=1 // pred_check
      _
    $region3: #{_forward.1} parent=1 // pred_check_branch
      %12 = sbr.rel (0) target = $region5
    $region4: #{_forward.1} parent=1 // pred_region
      _
    $region5: #{_forward.1} parent=1 // pred_fallthru
      _
    // Predicated region
    $region6: #{_forward.1} parent=1 // pred_check
      _
    $region7: #{_forward.1} parent=1 // pred_check_branch
      %14 = sbr.rel (0) target = $region9
    $region8: #{_forward.1} parent=1 // pred_region
      _
    $region9: #{_forward.1} parent=1 // pred_fallthru
      _
    // Predicated region
    $region10: #{_forward.1} parent=1 // pred_check
      _
    $region11: #{_forward.1} parent=1 // pred_check_branch
      %16 = sbr.rel (0) target = $region13
    $region12: #{_forward.1} parent=1 // pred_region
      _
    $region13: #{_forward.1} parent=1 // pred_fallthru
      _
    // Predicated region
    $region14: #{_forward.1} parent=1 // pred_check
      _
    $region15: #{_forward.1} parent=1 // pred_check_branch
      %18 = sbr.rel (0) target = $region17
    $region16: #{_forward.1} parent=1 // pred_region
      _
    $region17: #{_forward.1} parent=1 // pred_fallthru
      _
    // Predicated region
    $region18: #{_forward.1} parent=1 // pred_check
      _
    $region19: #{_forward.1} parent=1 // pred_check_branch
      %20 = sbr.rel (0) target = $region21
    $region20: #{_forward.1} parent=1 // pred_region
      _
    $region21: #{_forward.1} parent=1 // pred_fallthru
      _
    %p21 = scmp.eq.s32.totalorder 0, 0
    // Predicated region
    $region22: #{_forward.1} parent=1 // pred_check
      %p22 = pneg %p21
    $region23: #{_forward.1} parent=1 // pred_check_branch
      %24 = sbr.rel (%p22) target = $region25
    $region24: #{_forward.1} parent=1 // pred_region
      %vm25 = vcmask 254976
      %26 = vst.msk [vmem:[#allocation2] sm:$0x3] %vm25, 0.0
    $region25: #{_forward.1} parent=1 // pred_fallthru
      _
    %v27 = vld [vmem:[#allocation2] sm:$0x3]
    %v28 = vld [vmem:[%s0] sm:$0xff]
    %v29 = vld [vmem:[%s0 + $0x8] sm:$0xff]
    %v30 = vld [vmem:[%s0 + $0x10] sm:$0xff]
    %v31 = vld [vmem:[%s0 + $0x18] sm:$0xff]
    %v32 = vld [vmem:[%s0 + $0x20] sm:$0xff]
    %v33 = vld [vmem:[%s0 + $0x28] sm:$0xff]
    %v34 = vld [vmem:[%s0 + $0x30] sm:$0xff]
    %v35 = vld [vmem:[%s0 + $0x38] sm:$0xff]
    %v36 = vld [vmem:[%s0 + $0x40] sm:$0xff]
    %v37 = vld [vmem:[%s0 + $0x48] sm:$0xff]
    %v38 = vld [vmem:[%s0 + $0x50] sm:$0xff]
    %v39 = vld [vmem:[%s0 + $0x58] sm:$0xff]
    %v40 = vld [vmem:[%s0 + $0x60] sm:$0xff]
    %v41 = vld [vmem:[%s0 + $0x68] sm:$0xff]
    %v42 = vld [vmem:[%s0 + $0x70] sm:$0xff]
    %v43 = vld [vmem:[%s0 + $0x78] sm:$0xff]
    %v44 = vadd.f32 %v28, %v29
    %45 = vadd.xlane.f32.xlu0 %v44
    %v46 = vpop.xlane.xlu0 %45
    %v47 = vadd.f32 %v30, %v31
    %48 = vadd.xlane.f32.xlu0 %v47
    %v49 = vpop.xlane.xlu0 %48
    %v50 = vadd.f32 %v32, %v33
    %51 = vadd.xlane.f32.xlu0 %v50
    %v52 = vpop.xlane.xlu0 %51
    %v53 = vadd.f32 %v34, %v35
    %54 = vadd.xlane.f32.xlu0 %v53
    %v55 = vpop.xlane.xlu0 %54
    %v56 = vadd.f32 %v36, %v37
    %57 = vadd.xlane.f32.xlu0 %v56
    %v58 = vpop.xlane.xlu0 %57
    %v59 = vadd.f32 %v38, %v39
    %60 = vadd.xlane.f32.xlu0 %v59
    %v61 = vpop.xlane.xlu0 %60
    %v62 = vadd.f32 %v40, %v41
    %63 = vadd.xlane.f32.xlu0 %v62
    %v64 = vpop.xlane.xlu0 %63
    %v65 = vadd.f32 %v42, %v43
    %66 = vadd.xlane.f32.xlu0 %v65
    %v67 = vpop.xlane.xlu0 %66
    %v76 = vlaneseq
    %v77 = vand.u32 %v76, 127
    %v78 = vlaneseq
    %v79 = vshrl.u32 %v78, 7
    %v80 = vsub.s32 %v77, %v79
    %v81 = vrot.slane %v46, %v80
    %v82 = vadd.s32 %v77, 4294967288
    %v83 = vlaneseq
    %v84 = vshrl.u32 %v83, 7
    %v85 = vsub.s32 %v82, %v84
    %v86 = vrot.slane %v49, %v85
    %vm87 = vcmask 130112
    %v88 = vsel %vm87, %v86, %v81
    %v89 = vadd.s32 %v77, 4294967280
    %v90 = vlaneseq
    %v91 = vshrl.u32 %v90, 7
    %v92 = vsub.s32 %v89, %v91
    %v93 = vrot.slane %v52, %v92
    %vm94 = vcmask 195712
    %v95 = vsel %vm94, %v93, %v88
    %v96 = vadd.s32 %v77, 4294967272
    %v97 = vlaneseq
    %v98 = vshrl.u32 %v97, 7
    %v99 = vsub.s32 %v96, %v98
    %v100 = vrot.slane %v55, %v99
    %vm101 = vcmask 261312
    %v102 = vsel %vm101, %v100, %v95
    %v103 = vlaneseq
    %v104 = vshrl.u32 %v103, 7
    %v105 = vsub.s32 %v77, %v104
    %v106 = vrot.slane %v58, %v105
    %v107 = vlaneseq
    %v108 = vshrl.u32 %v107, 7
    %v109 = vsub.s32 %v82, %v108
    %v110 = vrot.slane %v61, %v109
    %v111 = vsel %vm87, %v110, %v106
    %v112 = vlaneseq
    %v113 = vshrl.u32 %v112, 7
    %v114 = vsub.s32 %v89, %v113
    %v115 = vrot.slane %v64, %v114
    %v116 = vsel %vm94, %v115, %v111
    %v117 = vlaneseq
    %v118 = vshrl.u32 %v117, 7
    %v119 = vsub.s32 %v96, %v118
    %v120 = vrot.slane %v67, %v119
    %v121 = vsel %vm101, %v120, %v116
    %vm122 = vcmask 1041409
    %v123 = vsel %vm122, %v121, %v102
    %v125 = vadd.f32 %v27, %v123
    %vm126 = vcmask 254976
    %127 = vst.msk [vmem:[#allocation2] sm:$0x3] %vm126, %v125
    // Predicated region
    $region26: #{_forward.1} parent=1 // pred_check
      %p128 = pneg %p21
    $region27: #{_forward.1} parent=1 // pred_check_branch
      %130 = sbr.rel (%p128) target = $region29
    $region28: #{_forward.1} parent=1 // pred_region
      %v131 = vld [vmem:[#allocation2] sm:$0x3]
      %v132 = vld [vmem:[%s1] sm:$0xff]
      %v133 = vld [vmem:[%s1 + $0x8] sm:$0xff]
      %v134 = vld [vmem:[%s1 + $0x10] sm:$0xff]
      %v135 = vld [vmem:[%s1 + $0x18] sm:$0xff]
      %v136 = vld [vmem:[%s2] sm:$0x1]
      %v138 = vlaneseq
      %v139 = vshrl.u32 %v138, 7
      %v140 = vsub.s32 0, %v139
      %v141 = vrot.slane %v136, %v140
      %vm143 = vcmask 261120
      %v145 = vsel %vm143, %v131, 0
      %147 = vmatprep.subr.mxu0 0.0
      %148 = vmatpush1.msra.mxu0 %v132
      %149 = vmatprep.subr.mxu0 0.0
      %150 = vmatpush1.msra.mxu0 %v133
      %151 = vmatprep.subr.mxu0 0.0
      %152 = vmatpush1.msra.mxu0 %v134
      %153 = vmatprep.subr.mxu0 0.0
      %154 = vmatpush1.msra.mxu0 %v135
      %155 = vmatprep.subr.mxu0 0.0
      %156 = vmatpush1.msra.mxu0 0.0
      %157 = vmatprep.subr.mxu0 0.0
      %158 = vmatpush1.msra.mxu0 0.0
      %159 = vmatprep.subr.mxu0 0.0
      %160 = vmatpush1.msra.mxu0 0.0
      %161 = vmatprep.subr.mxu0 0.0
      %162 = vmatpush1.msra.mxu0 0.0
      %163 = vmatprep.subr.mxu0 0.0
      %164 = vmatpush1.msra.mxu0 0.0
      %165 = vmatprep.subr.mxu0 0.0
      %166 = vmatpush1.msra.mxu0 0.0
      %167 = vmatprep.subr.mxu0 0.0
      %168 = vmatpush1.msra.mxu0 0.0
      %169 = vmatprep.subr.mxu0 0.0
      %170 = vmatpush1.msra.mxu0 0.0
      %171 = vmatprep.subr.mxu0 0.0
      %172 = vmatpush1.msra.mxu0 0.0
      %173 = vmatprep.subr.mxu0 0.0
      %174 = vmatpush1.msra.mxu0 0.0
      %175 = vmatprep.subr.mxu0 0.0
      %176 = vmatpush1.msra.mxu0 0.0
      %177 = vmatprep.subr.mxu0 0.0
      %178 = vmatpush1.msra.mxu0 0.0
      %179 = vmatprep.subr.mxu0 0.0
      %180 = vmatpush1.msra.mxu0 0.0
      %181 = vmatprep.subr.mxu0 0.0
      %182 = vmatpush1.msra.mxu0 0.0
      %183 = vmatprep.subr.mxu0 0.0
      %184 = vmatpush1.msra.mxu0 0.0
      %185 = vmatprep.subr.mxu0 0.0
      %186 = vmatpush1.msra.mxu0 0.0
      %187 = vmatprep.subr.mxu0 0.0
      %188 = vmatpush1.msra.mxu0 0.0
      %189 = vmatprep.subr.mxu0 0.0
      %190 = vmatpush1.msra.mxu0 0.0
      %191 = vmatprep.subr.mxu0 0.0
      %192 = vmatpush1.msra.mxu0 0.0
      %193 = vmatprep.subr.mxu0 0.0
      %194 = vmatpush1.msra.mxu0 0.0
      %195 = vmatprep.subr.mxu0 0.0
      %196 = vmatpush1.msra.mxu0 0.0
      %197 = vmatprep.subr.mxu0 0.0
      %198 = vmatpush1.msra.mxu0 0.0
      %199 = vmatprep.subr.mxu0 0.0
      %200 = vmatpush1.msra.mxu0 0.0
      %201 = vmatprep.subr.mxu0 0.0
      %202 = vmatpush1.msra.mxu0 0.0
      %203 = vmatprep.subr.mxu0 0.0
      %204 = vmatpush1.msra.mxu0 0.0
      %205 = vmatprep.subr.mxu0 0.0
      %206 = vmatpush1.msra.mxu0 0.0
      %207 = vmatprep.subr.mxu0 0.0
      %208 = vmatpush1.msra.mxu0 0.0
      %209 = vmatprep.subr.mxu0 0.0
      %210 = vmatpush1.msra.mxu0 0.0
      %211 = vmatprep.mubr.f32.mxu0 0.0
      %212 = vmatmul.mubr.f32.gmra.mrb[0].mxu0 %v145
      %v213 = vpop.f32.mrb[0].mxu0
      %v214 = vadd.f32 %v141, %v213
      %v215 = vpop.f32.mrb[0].mxu0
      %216 = vdwg.mxu0
      %v217 = vmul.f32 %v214, 0.01
      %v218 = vmax.f32 %v214, %v217
      %v219 = vld [vmem:[%s3] sm:$0xff]
      %v220 = vld [vmem:[%s4] sm:$0x1]
      %v222 = vlaneseq
      %v223 = vshrl.u32 %v222, 7
      %v224 = vsub.s32 0, %v223
      %v225 = vrot.slane %v220, %v224
      %vm227 = vcmask 64512
      %v229 = vsel %vm227, %v218, 0
      %231 = vmatprep.subr.mxu0 0.0
      %232 = vmatpush1.msra.mxu0 %v219
      %233 = vmatprep.subr.mxu0 0.0
      %234 = vmatpush1.msra.mxu0 0.0
      %235 = vmatprep.subr.mxu0 0.0
      %236 = vmatpush1.msra.mxu0 0.0
      %237 = vmatprep.subr.mxu0 0.0
      %238 = vmatpush1.msra.mxu0 0.0
      %239 = vmatprep.subr.mxu0 0.0
      %240 = vmatpush1.msra.mxu0 0.0
      %241 = vmatprep.subr.mxu0 0.0
      %242 = vmatpush1.msra.mxu0 0.0
      %243 = vmatprep.subr.mxu0 0.0
      %244 = vmatpush1.msra.mxu0 0.0
      %245 = vmatprep.subr.mxu0 0.0
      %246 = vmatpush1.msra.mxu0 0.0
      %247 = vmatprep.subr.mxu0 0.0
      %248 = vmatpush1.msra.mxu0 0.0
      %249 = vmatprep.subr.mxu0 0.0
      %250 = vmatpush1.msra.mxu0 0.0
      %251 = vmatprep.subr.mxu0 0.0
      %252 = vmatpush1.msra.mxu0 0.0
      %253 = vmatprep.subr.mxu0 0.0
      %254 = vmatpush1.msra.mxu0 0.0
      %255 = vmatprep.subr.mxu0 0.0
      %256 = vmatpush1.msra.mxu0 0.0
      %257 = vmatprep.subr.mxu0 0.0
      %258 = vmatpush1.msra.mxu0 0.0
      %259 = vmatprep.subr.mxu0 0.0
      %260 = vmatpush1.msra.mxu0 0.0
      %261 = vmatprep.subr.mxu0 0.0
      %262 = vmatpush1.msra.mxu0 0.0
      %263 = vmatprep.subr.mxu0 0.0
      %264 = vmatpush1.msra.mxu0 0.0
      %265 = vmatprep.subr.mxu0 0.0
      %266 = vmatpush1.msra.mxu0 0.0
      %267 = vmatprep.subr.mxu0 0.0
      %268 = vmatpush1.msra.mxu0 0.0
      %269 = vmatprep.subr.mxu0 0.0
      %270 = vmatpush1.msra.mxu0 0.0
      %271 = vmatprep.subr.mxu0 0.0
      %272 = vmatpush1.msra.mxu0 0.0
      %273 = vmatprep.subr.mxu0 0.0
      %274 = vmatpush1.msra.mxu0 0.0
      %275 = vmatprep.subr.mxu0 0.0
      %276 = vmatpush1.msra.mxu0 0.0
      %277 = vmatprep.subr.mxu0 0.0
      %278 = vmatpush1.msra.mxu0 0.0
      %279 = vmatprep.subr.mxu0 0.0
      %280 = vmatpush1.msra.mxu0 0.0
      %281 = vmatprep.subr.mxu0 0.0
      %282 = vmatpush1.msra.mxu0 0.0
      %283 = vmatprep.subr.mxu0 0.0
      %284 = vmatpush1.msra.mxu0 0.0
      %285 = vmatprep.subr.mxu0 0.0
      %286 = vmatpush1.msra.mxu0 0.0
      %287 = vmatprep.subr.mxu0 0.0
      %288 = vmatpush1.msra.mxu0 0.0
      %289 = vmatprep.subr.mxu0 0.0
      %290 = vmatpush1.msra.mxu0 0.0
      %291 = vmatprep.subr.mxu0 0.0
      %292 = vmatpush1.msra.mxu0 0.0
      %293 = vmatprep.subr.mxu0 0.0
      %294 = vmatpush1.msra.mxu0 0.0
      %295 = vmatprep.mubr.f32.mxu0 0.0
      %296 = vmatmul.mubr.f32.gmra.mrb[0].mxu0 %v229
      %v297 = vpop.f32.mrb[0].mxu0
      %v298 = vadd.f32 %v225, %v297
      %v299 = vpop.f32.mrb[0].mxu0
      %300 = vdwg.mxu0
      %vm301 = vcmask 9216
      %302 = vst.msk [vmem:[#allocation3] sm:$0x3] %vm301, %v298
    $region29: #{_forward.1} parent=1 // pred_fallthru
      _
    // Predicated region
    $region30: #{_forward.1} parent=1 // pred_check
      _
    $region31: #{_forward.1} parent=1 // pred_check_branch
      %304 = sbr.rel (0) target = $region33
    $region32: #{_forward.1} parent=1 // pred_region
      %s306 = ssub.s32 32, 32
      %307 = vsyncadd [#allocation4], %s306
      %s309 = sshll.u32 [#allocation3], 4
      %s310 = int_to_ptr.vmem [resolvable:$true] %s309
      %312 = dma.vmem_to_hbm [thread:$0]  %s310, 32, %s5, [#allocation4]
    $region33: #{_forward.1} parent=1 // pred_fallthru
      _
    // Predicated region
    $region34: #{_forward.1} parent=1 // pred_check
      _
    $region35: #{_forward.1} parent=1 // pred_check_branch
      %314 = sbr.rel (0) target = $region37
    $region36: #{_forward.1} parent=1 // pred_region
      %315 = dma.done [#allocation4], 32
    $region37: #{_forward.1} parent=1 // pred_fallthru
      _
    %316 = vsyncpa [#allocation4], 1

</llo_original>
